<compile_context>
chip_gen: v6e
topology: v6e:2x2x1
jax: 0.10.0
libtpu: 0.0.40
codegen_flags: <defaults>
</compile_context>

<pallas_src>
import functools

import jax
import jax.numpy as jnp
from jax.experimental import pallas as pl
from jax.experimental.pallas import tpu as pltpu


def _label_smoothing_kernel(x_ref, t_ref, o_ref, *, confidence, smoothing):
    x = x_ref[...]                                      # (tb, C) native dtype
    tb, c = x.shape
    xf = x.astype(jnp.float32)                          # single hoisted cast

    # Fused log-softmax statistics.
    m = jnp.max(xf, axis=-1, keepdims=True)             # (tb, 1)
    ex = jnp.exp(xf - m)                                 # (tb, C) f32 (EUP)
    lse = jnp.log(jnp.sum(ex, axis=-1, keepdims=True))   # (tb, 1)
    logz = m + lse                                        # (tb, 1)

    # Gather x at target via broadcast compare against a (1, C) lane iota
    # (no dynamic gather on TPU).
    cls_ids = jax.lax.broadcasted_iota(jnp.int32, (1, c), 1)   # (1, C)
    tgt = t_ref[...]                                            # (tb, 1) int32
    x_t = jnp.sum(jnp.where(cls_ids == tgt, xf, 0.0),
                  axis=-1, keepdims=True)                       # (tb, 1)
    sum_x = jnp.sum(xf, axis=-1, keepdims=True)                 # (tb, 1)

    nll = logz - x_t                                     # (tb, 1)
    smooth = logz - sum_x * (1.0 / c)                    # (tb, 1)
    o_ref[...] = confidence * nll + smoothing * smooth   # per-row loss block


def _logits_tile_budget_bytes():
    """Bytes available for the double-buffered logits tiles (generation-aware)."""
    try:
        cap = int(pltpu.get_tpu_info().vmem_capacity_bytes)
    except Exception:
        cap = 64 << 20  # conservative fallback if hw query is unavailable
    # ~24 MiB of logits tiles on 128-MiB parts (v5e/v6e); tighter on v7x (64 MiB).
    return (24 << 20) if cap >= (96 << 20) else (16 << 20)


def label_smoothing_loss(x, target, smoothing=0.0, block_b=512):
    """x: (B, C) float logits; target: (B,) integer class indices."""
    B, C = x.shape
    confidence = 1.0 - smoothing
    itemsize = jnp.dtype(x.dtype).itemsize
    packing = max(8, 32 // itemsize)          # sublane packing: f32 8 / bf16 16 / i8 32

    # Size the batch tile: double-buffered (tb, C) logits tiles fit the budget.
    budget = _logits_tile_budget_bytes()
    max_rows = budget // (2 * C * itemsize)   # single /2 for double buffering
    tb = min(B, block_b, max(max_rows, packing))
    if tb < B:
        tb = max(packing, (tb // packing) * packing)   # dtype-aware sublane rounding
    n_tiles = pl.cdiv(B, tb)

    # For very large C even a `packing`-row tile may exceed the default scoped
    # window; raise the limit accordingly (real fix is the C-tiling TODO).
    tile_bytes = tb * C * itemsize
    vmem_limit = int(max(32 << 20, 2 * tile_bytes + (8 << 20)))

    t2 = target.astype(jnp.int32).reshape(B, 1)

    kernel = functools.partial(
        _label_smoothing_kernel,
        confidence=float(confidence), smoothing=float(smoothing))

    cost = pl.CostEstimate(
        flops=6 * B * C,
        transcendentals=B * C + B,
        bytes_accessed=B * C * itemsize + B * 4 + B * 4)

    per_row = pl.pallas_call(
        kernel,
        out_shape=jax.ShapeDtypeStruct((B, 1), jnp.float32),
        grid=(n_tiles,),
        in_specs=[
            pl.BlockSpec((tb, C), lambda i: (i, 0)),   # logits tile
            pl.BlockSpec((tb, 1), lambda i: (i, 0)),   # targets tile
        ],
        out_specs=pl.BlockSpec((tb, 1), lambda i: (i, 0)),   # per-row losses
        compiler_params=pltpu.CompilerParams(
            dimension_semantics=("parallel",),          # independent batch tiles
            vmem_limit_bytes=vmem_limit),
        cost_estimate=cost,
    )(x, t2)

    # Tiny final reduction in the wrapper (keeps the grid fully parallel).
    return jnp.sum(per_row) * (1.0 / B)


def _reference(x, target, smoothing):
    confidence = 1.0 - smoothing
    logprobs = jax.nn.log_softmax(x.astype(jnp.float32), axis=-1)
    nll = -jnp.take_along_axis(logprobs, target[:, None].astype(jnp.int32),
                               axis=-1)[:, 0]
    smooth = -jnp.mean(logprobs, axis=-1)
    return jnp.mean(confidence * nll + smoothing * smooth)


if __name__ == "__main__":
    key = jax.random.PRNGKey(0)
    kx, kt = jax.random.split(key)

    B, C = 20, 128            # small (batch, num_classes); B not divisible by
    smoothing = 0.1           # the tile to exercise the partial-tile path

    x = jax.random.normal(kx, (B, C), dtype=jnp.float32)
    target = jax.random.randint(kt, (B,), 0, C, dtype=jnp.int32)

    # block_b=8 just to exercise a multi-tile grid at this tiny size;
    # real use keeps the default ~512-row tiles.
    loss = label_smoothing_loss(x, target, smoothing=smoothing, block_b=8)
    loss = jax.block_until_ready(loss)

    ref = _reference(x, target, smoothing)
    assert jnp.allclose(loss, ref, atol=1e-5, rtol=1e-5), (loss, ref)

    print("KERNEL_OK")
</pallas_src>

<mosaic_0001>
module attributes {stable_mosaic.version = 11 : i64} {
  func.func @_label_smoothing_kernel(%arg0: i32, %arg1: memref<8x128xf32, #tpu.memory_space<vmem>>, %arg2: memref<8x1xi32, #tpu.memory_space<vmem>>, %arg3: memref<8x1xf32, #tpu.memory_space<vmem>>) attributes {dimension_semantics = [#tpu.dimension_semantics<parallel>], iteration_bounds = array<i64: 3>, scalar_prefetch = 0 : i64, scratch_operands = 0 : i64, tpu.core_type = #tpu.core_type<tc>, window_params = [{transform_indices = @transform_0, window_bounds = array<i64: 8, 128>}, {transform_indices = @transform_1, window_bounds = array<i64: 8, 1>}, {transform_indices = @transform_2, window_bounds = array<i64: 8, 1>}]} {
    %c0 = arith.constant 0 : index
    %c0_0 = arith.constant 0 : index
    %0 = vector.load %arg1[%c0, %c0_0] : memref<8x128xf32, #tpu.memory_space<vmem>>, vector<8x128xf32>
    %cst = arith.constant dense<0xFF800000> : vector<8xf32>
    %1 = vector.multi_reduction <maximumf>, %0, %cst [1] : vector<8x128xf32> to vector<8xf32>
    %2 = vector.shape_cast %1 : vector<8xf32> to vector<8x1xf32>
    %3 = vector.broadcast %2 : vector<8x1xf32> to vector<8x128xf32>
    %4 = arith.subf %0, %3 : vector<8x128xf32>
    %5 = math.exp %4 : vector<8x128xf32>
    %cst_1 = arith.constant dense<0.000000e+00> : vector<8xf32>
    %6 = vector.multi_reduction <add>, %5, %cst_1 [1] : vector<8x128xf32> to vector<8xf32>
    %7 = vector.shape_cast %6 : vector<8xf32> to vector<8x1xf32>
    %8 = math.log %7 : vector<8x1xf32>
    %9 = arith.addf %2, %8 : vector<8x1xf32>
    %10 = tpu.iota {dimensions = array<i32: 1>} : vector<1x128xi32>
    %c0_2 = arith.constant 0 : index
    %c0_3 = arith.constant 0 : index
    %11 = vector.load %arg2[%c0_2, %c0_3] : memref<8x1xi32, #tpu.memory_space<vmem>>, vector<8x1xi32>
    %12 = vector.broadcast %10 : vector<1x128xi32> to vector<8x128xi32>
    %13 = vector.broadcast %11 : vector<8x1xi32> to vector<8x128xi32>
    %14 = arith.cmpi eq, %12, %13 : vector<8x128xi32>
    %cst_4 = arith.constant 0.000000e+00 : f32
    %15 = vector.broadcast %cst_4 : f32 to vector<8x128xf32>
    %16 = arith.select %14, %0, %15 : vector<8x128xi1>, vector<8x128xf32>
    %cst_5 = arith.constant dense<0.000000e+00> : vector<8xf32>
    %17 = vector.multi_reduction <add>, %16, %cst_5 [1] : vector<8x128xf32> to vector<8xf32>
    %18 = vector.shape_cast %17 : vector<8xf32> to vector<8x1xf32>
    %cst_6 = arith.constant dense<0.000000e+00> : vector<8xf32>
    %19 = vector.multi_reduction <add>, %0, %cst_6 [1] : vector<8x128xf32> to vector<8xf32>
    %20 = vector.shape_cast %19 : vector<8xf32> to vector<8x1xf32>
    %21 = arith.subf %9, %18 : vector<8x1xf32>
    %cst_7 = arith.constant 7.812500e-03 : f32
    %22 = vector.broadcast %cst_7 : f32 to vector<8x1xf32>
    %23 = arith.mulf %20, %22 : vector<8x1xf32>
    %24 = arith.subf %9, %23 : vector<8x1xf32>
    %cst_8 = arith.constant 0.899999976 : f32
    %25 = vector.broadcast %cst_8 : f32 to vector<8x1xf32>
    %26 = arith.mulf %25, %21 : vector<8x1xf32>
    %cst_9 = arith.constant 1.000000e-01 : f32
    %27 = vector.broadcast %cst_9 : f32 to vector<8x1xf32>
    %28 = arith.mulf %27, %24 : vector<8x1xf32>
    %29 = arith.addf %26, %28 : vector<8x1xf32>
    %c0_10 = arith.constant 0 : index
    %c0_11 = arith.constant 0 : index
    %30 = vector.load %arg3[%c0_10, %c0_11] : memref<8x1xf32, #tpu.memory_space<vmem>>, vector<8x1xf32>
    tpu.vector_store %arg3[%c0_10, %c0_11], %29 {strides = array<i32>} : memref<8x1xf32, #tpu.memory_space<vmem>>, vector<8x1xf32>,
    return
  }
  func.func @transform_0(%arg0: i32) -> (i32, i32) {
    %c0_i32 = arith.constant 0 : i32
    %c0_i32_0 = arith.constant 0 : i32
    return %arg0, %c0_i32 : i32, i32
  }
  func.func @transform_1(%arg0: i32) -> (i32, i32) {
    %c0_i32 = arith.constant 0 : i32
    %c0_i32_0 = arith.constant 0 : i32
    return %arg0, %c0_i32 : i32, i32
  }
  func.func @transform_2(%arg0: i32) -> (i32, i32) {
    %c0_i32 = arith.constant 0 : i32
    %c0_i32_0 = arith.constant 0 : i32
    return %arg0, %c0_i32 : i32, i32
  }
}

</mosaic_0001>

<llo_original>
// kernel: tpu_custom_call.1
$region0: #{tpu_custom_call.1}
  #allocation0 [shape = 'u32[]', space=smem, size = 0x4, offset = 0x4, fixed_abs, tag = 'smem constant byte address 0x4 - core index']
  #allocation1 [shape = 'u32[144,128]{1,0:T(1,128)}', space=vmem, size = 0x12000, scoped, tag = 'internal scratch']
  %s0 = inlined_call_operand.vmem [shape: f32[20,128], index: 0, kind: input, shape index: {}]
  %s1 = inlined_call_operand.vmem [shape: s32[20,1], index: 1, kind: input, shape index: {}]
  %s2 = inlined_call_operand.vmem [shape: f32[20,1], index: 2, kind: output, shape index: {}]
  %s3 = sld [smem:[#allocation0]]
  $region41: #{tpu_custom_call.1} parent=0
    _
  %s5 = ssub.s32 1, %s3
  %s6 = scalar_select 0, %s5, %s3
  loop: start=0, step=1, limit=5
  $region2: #{tpu_custom_call.1} parent=0 // loop_pre_header
    _
  $region3: #{tpu_custom_call.1} parent=0 // loop_header
    %s8 = sphi 0, %s12
    %p9 = scmp.ge.s32.totalorder %s8, 5
    %s18 = sphi 0, %s20
    %s21 = sphi 0, %s18
    %s22 = sphi 0, %s21
    %s38 = sphi 0, %s22
    %s44 = sphi 0, %s46
    %s47 = sphi 0, %s44
    %s48 = sphi 0, %s47
    %s64 = sphi 0, %s48
    %s70 = sphi 0, %s72
    %s73 = sphi 0, %s70
    %s74 = sphi 0, %s73
    %s90 = sphi 0, %s74
  $region4: #{tpu_custom_call.1} parent=0 // loop_header_branch
    %11 = sbr.rel (%p9) target = $region8
  $region5: #{tpu_custom_call.1} parent=0 // loop_body
    %s13 = ssub.s32 %s8, 1
    %s14 = ssub.s32 %s8, 2
    %s15 = sadd.s32 %s8, 1
    %s16 = ssub.s32 %s8, %s15
    %p17 = scmp.eq.s32.totalorder %s16, 0
    %s19 = sadd.s32 %s18, 1
    %s20 = scalar_select %p17, %s18, %s19
    %p23 = pneg %p17
    %p24 = scmp.eq.s32.totalorder %s8, 2
    %p25 = por %p23, %p24
    %p26 = scmp.ne.s32.totalorder %s18, %s21
    %p27 = scmp.eq.s32.totalorder %s8, 0
    %p28 = por %p26, %p27
    %p29 = scmp.ne.s32.totalorder %s18, %s21
    %p30 = scmp.eq.s32.totalorder %s13, 2
    %p31 = por %p29, %p30
    %p32 = scmp.ne.s32.totalorder %s21, %s22
    %p33 = scmp.eq.s32.totalorder %s13, 0
    %p34 = por %p32, %p33
    %p35 = scmp.ne.s32.totalorder %s21, %s22
    %p36 = scmp.eq.s32.totalorder %s14, 2
    %p37 = por %p35, %p36
    %p39 = scmp.ne.s32.totalorder %s22, %s38
    %p40 = scmp.eq.s32.totalorder %s14, 0
    %p41 = por %p39, %p40
    %s42 = ssub.s32 %s8, %s15
    %p43 = scmp.eq.s32.totalorder %s42, 0
    %s45 = sadd.s32 %s44, 1
    %s46 = scalar_select %p43, %s44, %s45
    %p49 = pneg %p43
    %p50 = scmp.eq.s32.totalorder %s8, 2
    %p51 = por %p49, %p50
    %p52 = scmp.ne.s32.totalorder %s44, %s47
    %p53 = scmp.eq.s32.totalorder %s8, 0
    %p54 = por %p52, %p53
    %p55 = scmp.ne.s32.totalorder %s44, %s47
    %p56 = scmp.eq.s32.totalorder %s13, 2
    %p57 = por %p55, %p56
    %p58 = scmp.ne.s32.totalorder %s47, %s48
    %p59 = scmp.eq.s32.totalorder %s13, 0
    %p60 = por %p58, %p59
    %p61 = scmp.ne.s32.totalorder %s47, %s48
    %p62 = scmp.eq.s32.totalorder %s14, 2
    %p63 = por %p61, %p62
    %p65 = scmp.ne.s32.totalorder %s48, %s64
    %p66 = scmp.eq.s32.totalorder %s14, 0
    %p67 = por %p65, %p66
    %s68 = ssub.s32 %s8, %s15
    %p69 = scmp.eq.s32.totalorder %s68, 0
    %s71 = sadd.s32 %s70, 1
    %s72 = scalar_select %p69, %s70, %s71
    %p75 = pneg %p69
    %p76 = scmp.eq.s32.totalorder %s8, 2
    %p77 = por %p75, %p76
    %p78 = scmp.ne.s32.totalorder %s70, %s73
    %p79 = scmp.eq.s32.totalorder %s8, 0
    %p80 = por %p78, %p79
    %p81 = scmp.ne.s32.totalorder %s70, %s73
    %p82 = scmp.eq.s32.totalorder %s13, 2
    %p83 = por %p81, %p82
    %p84 = scmp.ne.s32.totalorder %s73, %s74
    %p85 = scmp.eq.s32.totalorder %s13, 0
    %p86 = por %p84, %p85
    %p87 = scmp.ne.s32.totalorder %s73, %s74
    %p88 = scmp.eq.s32.totalorder %s14, 2
    %p89 = por %p87, %p88
    %p91 = scmp.ne.s32.totalorder %s74, %s90
    %p92 = scmp.eq.s32.totalorder %s14, 0
    %p93 = por %p91, %p92
    %p94 = scmp.le.s32.totalorder 1, %s8
    %p95 = scmp.lt.s32.totalorder %s8, 4
    %p96 = pnand %p94, %p95
    %p97 = pneg %p96
    // Predicated region
    $region9: #{tpu_custom_call.1} parent=5 // pred_check
      _
    $region10: #{tpu_custom_call.1} parent=5 // pred_check_branch
      %99 = sbr.rel (%p96) target = $region12
    $region11: #{tpu_custom_call.1} parent=5 // pred_region
      %s100 = ssub.s32 %s8, 1
    $region12: #{tpu_custom_call.1} parent=5 // pred_fallthru
      _
    %p101 = scmp.lt.s32.totalorder %s8, 3
    // Predicated region
    $region13: #{tpu_custom_call.1} parent=5 // pred_check
      %p102 = pneg %p101
    $region14: #{tpu_custom_call.1} parent=5 // pred_check_branch
      %104 = sbr.rel (%p102) target = $region16
    $region15: #{tpu_custom_call.1} parent=5 // pred_region
      // Predicated region
      $region17: #{tpu_custom_call.1} parent=15 // pred_check
        %p105 = pneg %p28
      $region18: #{tpu_custom_call.1} parent=15 // pred_check_branch
        %107 = sbr.rel (%p105) target = $region20
      $region19: #{tpu_custom_call.1} parent=15 // pred_region
        %p108 = scmp.lt.s32.totalorder %s8, 2
        %s109 = scalar_select %p108, %s8, 2
        %s110 = smul.addr %s109, 8
        %s111 = scalar_lea.vmem %s0, %s110
      $region20: #{tpu_custom_call.1} parent=15 // pred_fallthru
        _
      // Predicated region
      $region21: #{tpu_custom_call.1} parent=15 // pred_check
        %p112 = pneg %p54
      $region22: #{tpu_custom_call.1} parent=15 // pred_check_branch
        %114 = sbr.rel (%p112) target = $region24
      $region23: #{tpu_custom_call.1} parent=15 // pred_region
        %p115 = scmp.lt.s32.totalorder %s8, 2
        %s116 = scalar_select %p115, %s8, 2
        %s117 = smul.addr %s116, 8
        %s118 = scalar_lea.vmem %s1, %s117
      $region24: #{tpu_custom_call.1} parent=15 // pred_fallthru
        _
    $region16: #{tpu_custom_call.1} parent=5 // pred_fallthru
      _
    %p119 = scmp.le.s32.totalorder 1, %s8
    %p120 = scmp.lt.s32.totalorder %s8, 4
    %p121 = pnand %p119, %p120
    %p122 = pneg %p121
    // Predicated region
    $region25: #{tpu_custom_call.1} parent=5 // pred_check
      _
    $region26: #{tpu_custom_call.1} parent=5 // pred_check_branch
      %124 = sbr.rel (%p121) target = $region28
    $region27: #{tpu_custom_call.1} parent=5 // pred_region
      %s125 = ssub.s32 %s8, 1
      %p126 = scmp.lt.s32.totalorder %s13, 2
      %s127 = scalar_select %p126, %s13, 2
      %s128 = smul.addr %s127, 8
      %s129 = scalar_lea.vmem %s0, %s128
      %p130 = pneg %p34
      %p131 = pneg %p31
      %p132 = scmp.lt.s32.totalorder %s13, 2
      %s133 = scalar_select %p132, %s13, 2
      %s134 = smul.addr %s133, 8
      %s135 = scalar_lea.vmem %s1, %s134
      %p136 = pneg %p60
      %p137 = pneg %p57
      %p138 = pneg %p86
      %p139 = pneg %p83
      %p140 = scmp.lt.s32.totalorder %s13, 2
      %s141 = scalar_select %p140, %s13, 2
      %s142 = smul.addr %s141, 8
      %s143 = scalar_lea.vmem %s2, %s142
      %p144 = scmp.lt.s32.totalorder %s13, 2
      %s145 = scalar_select %p144, %s13, 2
      %s146 = smul.addr %s145, 8
      %s147 = scalar_lea.vmem %s0, %s146
      %p148 = scmp.lt.s32.totalorder %s13, 2
      %s149 = scalar_select %p148, %s13, 2
      %s150 = smul.addr %s149, 8
      %s151 = scalar_lea.vmem %s1, %s150
      %p152 = scmp.lt.s32.totalorder %s13, 2
      %s153 = scalar_select %p152, %s13, 2
      %s154 = smul.addr %s153, 8
      %s155 = scalar_lea.vmem %s2, %s154
      %v156 = vld [vmem:[%s147] sm:$0xff]
      %157 = vmax.xlane.f32.xlu0 %v156
      %v158 = vpop.xlane.xlu0 %157
      %v159 = vsub.f32 %v156, %v158
      %v160 = vmul.f32 %v159, 1.442695
      %v161 = vpow.pop %v160
      %162 = vadd.xlane.f32.xlu0 %v161
      %v163 = vpop.xlane.xlu0 %162
      %v164 = vlog2.pop %v163
      %v165 = vmul.f32 %v164, 0.6931472
      %v166 = vadd.f32 %v158, %v165
      %v167 = vlaneseq
      %v168 = vand.u32 %v167, 127
      %v169 = vld [vmem:[%s151] sm:$0xff]
      %170 = vset.pattern.permute.xlu0 0
      %171 = vperm.xlu0 %170, %v169
      %v172 = vpop.permute.xlu0 %171
      %vm173 = vcmp.eq.s32.totalorder %v168, %v172
      %v174 = vsel %vm173, %v156, 0.0
      %175 = vadd.xlane.f32.xlu0 %v174
      %v176 = vpop.xlane.xlu0 %175
      %177 = vadd.xlane.f32.xlu0 %v156
      %v178 = vpop.xlane.xlu0 %177
      %v179 = vsub.f32 %v166, %v176
      %v180 = vmul.f32 %v178, 0.0078125
      %v181 = vsub.f32 %v166, %v180
      %v182 = vmul.f32 %v179, 0.9
      %v183 = vmul.f32 %v181, 0.1
      %v184 = vadd.f32 %v182, %v183
      %vm185 = vcmask 7168
      %186 = vst.msk [vmem:[%s155] sm:$0xff] %vm185, %v184
      %p187 = scmp.lt.s32.totalorder %s13, 2
      %s188 = scalar_select %p187, %s13, 2
      %s189 = smul.addr %s188, 8
      %s190 = scalar_lea.vmem %s2, %s189
      // Predicated region
      $region29: #{tpu_custom_call.1} parent=27 // pred_check
        %p191 = pneg %p83
      $region30: #{tpu_custom_call.1} parent=27 // pred_check_branch
        %193 = sbr.rel (%p191) target = $region32
      $region31: #{tpu_custom_call.1} parent=27 // pred_region
        _
      $region32: #{tpu_custom_call.1} parent=27 // pred_fallthru
        _
    $region28: #{tpu_custom_call.1} parent=5 // pred_fallthru
      _
    %p194 = scmp.le.s32.totalorder 2, %s8
    // Predicated region
    $region33: #{tpu_custom_call.1} parent=5 // pred_check
      %p195 = pneg %p194
    $region34: #{tpu_custom_call.1} parent=5 // pred_check_branch
      %197 = sbr.rel (%p195) target = $region36
    $region35: #{tpu_custom_call.1} parent=5 // pred_region
      %s198 = ssub.s32 %s8, 2
      // Predicated region
      $region37: #{tpu_custom_call.1} parent=35 // pred_check
        %p199 = pneg %p89
      $region38: #{tpu_custom_call.1} parent=35 // pred_check_branch
        %201 = sbr.rel (%p199) target = $region40
      $region39: #{tpu_custom_call.1} parent=35 // pred_region
        %p202 = scmp.lt.s32.totalorder %s14, 2
        %s203 = scalar_select %p202, %s14, 2
        %s204 = smul.addr %s203, 8
        %s205 = scalar_lea.vmem %s2, %s204
      $region40: #{tpu_custom_call.1} parent=35 // pred_fallthru
        _
    $region36: #{tpu_custom_call.1} parent=5 // pred_fallthru
      _
  $region6: #{tpu_custom_call.1} parent=0 // loop_footer
    %s12 = sadd.s32 1, %s8
  $region7: #{tpu_custom_call.1} parent=0 // loop_footer_branch
    %7 = sbr.rel target = $region3
  $region8: #{tpu_custom_call.1} parent=0 // loop_exit
    _

</llo_original>
